<compile_context>
chip_gen: v5e
topology: v5e:2x2
jax: 0.10.0
libtpu: 0.0.40
codegen_flags: <defaults>
</compile_context>

<pallas_src>
import functools
import math

import jax
import jax.numpy as jnp
from jax.experimental import pallas as pl
from jax.experimental.pallas import tpu as pltpu


def _round_up(x, m):
    return (x + m - 1) // m * m


def _weight_row_offsets(num_layers, hidden_size, seq_len):
    """Static row offsets of each weight segment inside the packed slab.

    Segments (in order): W_ih^0 (seq_len rows), W_ih^l (H rows) for l>0,
    then W_lin (H rows).  Each segment start is padded to a multiple of 8
    sublanes so in-kernel slices stay tile-aligned.
    """
    seg_sizes = [seq_len] + [hidden_size] * (num_layers - 1) + [hidden_size]
    offsets, off = [], 0
    for s in seg_sizes:
        offsets.append(off)
        off += _round_up(s, 8)
    return offsets, off  # (per-segment offsets, total padded rows)


def _make_lstm_kernel(num_layers, hidden_size, seq_len):
    H = hidden_size
    gate_cols = _round_up(3 * H, 128)          # [i | g | o | pad] lanes
    offsets, _ = _weight_row_offsets(num_layers, hidden_size, seq_len)

    def kernel(x_ref, w_ref, b_ref, out_ref):
        # NOTE: semantics baked in: a single LSTM time-step with zero initial
        # (h0, c0).  The recurrent W_hh matmul and the forget gate are
        # mathematically dead and intentionally omitted.  Do NOT reuse this
        # kernel for >1 real time steps or a nonzero initial state.
        inp = x_ref[...]                                         # (TM, seq_len)
        h = None
        for l in range(num_layers):
            in_l = seq_len if l == 0 else H
            w_ih = w_ref[offsets[l]:offsets[l] + in_l, :gate_cols]   # (in_l, 3H_pad)
            b = b_ref[l:l + 1, :gate_cols]                           # (1, 3H_pad)
            gates = jnp.dot(inp, w_ih,
                            preferred_element_type=jnp.float32) + b  # (TM, 3H_pad)

            sg = jax.nn.sigmoid(gates)          # one full-width (lane-dense) EUP sweep
            i_g = sg[:, 0 * H:1 * H]
            o_g = sg[:, 2 * H:3 * H]
            g_g = jnp.tanh(gates[:, 1 * H:2 * H])

            c = i_g * g_g                        # c0 = 0  ->  forget-gate term drops
            h = o_g * jnp.tanh(c)
            inp = h
            # Inter-layer dropout is a no-op at inference; not modeled.

        w_lin = w_ref[offsets[num_layers]:offsets[num_layers] + H, :]   # (H, n_cols)
        b_lin = b_ref[num_layers:num_layers + 1, :]                     # (1, n_cols)
        # Lane-dense store: (TM, n_cols) full tile, unmasked vst.
        out_ref[...] = jnp.dot(h, w_lin,
                               preferred_element_type=jnp.float32) + b_lin

    return kernel


def pack_params(params, *, num_layers, hidden_size, seq_len, pred_len):
    """Pack all weights/biases into two lane-aligned f32 slabs (do this once).

    Gate column order is [i | g | o | pad]; the forget gate is dropped (dead
    with c0 == 0) and W_hh is never shipped (dead with h0 == 0).
    """
    H = hidden_size
    gate_cols = _round_up(3 * H, 128)
    n_cols = max(gate_cols, _round_up(pred_len, 128))
    offsets, total_rows = _weight_row_offsets(num_layers, H, seq_len)

    w_slab = jnp.zeros((total_rows, n_cols), jnp.float32)
    b_slab = jnp.zeros((_round_up(num_layers + 1, 8), n_cols), jnp.float32)

    for l in range(num_layers):
        w_ih, w_hh, b_ih, b_hh = params["layers"][l]
        del w_hh  # dead: h0 == 0
        in_l = seq_len if l == 0 else H
        b = (b_ih + b_hh).astype(jnp.float32)
        # PyTorch gate order in w_ih / biases: [i | f | g | o]; keep i, g, o.
        for dst, src in enumerate((0, 2, 3)):
            w_slab = w_slab.at[offsets[l]:offsets[l] + in_l,
                               dst * H:(dst + 1) * H].set(
                w_ih[src * H:(src + 1) * H].T.astype(jnp.float32))
            b_slab = b_slab.at[l, dst * H:(dst + 1) * H].set(
                b[src * H:(src + 1) * H])

    w_slab = w_slab.at[offsets[num_layers]:offsets[num_layers] + H, :pred_len].set(
        params["w_lin"].T.astype(jnp.float32))
    b_slab = b_slab.at[num_layers, :pred_len].set(
        params["b_lin"].astype(jnp.float32))

    return w_slab, b_slab


@functools.partial(
    jax.jit,
    static_argnames=("num_layers", "hidden_size", "seq_len", "pred_len", "block_rows"),
)
def lstm_forward(x, w_slab, b_slab, *, num_layers, hidden_size, seq_len, pred_len,
                 block_rows=128):
    """x: (B, seq_len, 1) or (B, seq_len). Returns (B, pred_len, 1)."""
    batch = x.shape[0]
    H = hidden_size
    gate_cols = _round_up(3 * H, 128)
    total_rows, n_cols = w_slab.shape
    b_rows = b_slab.shape[0]

    # Batch-row tile: up to block_rows rows per MXU push; tiny batches pad to 8.
    tm = min(block_rows, _round_up(max(batch, 8), 8))
    b_pad = _round_up(max(batch, tm), tm)
    grid = (b_pad // tm,)

    x2d = x.reshape(batch, -1).astype(jnp.float32)             # (B, seq_len)
    x_p = jnp.zeros((b_pad, seq_len), jnp.float32).at[:batch].set(x2d)

    kernel = _make_lstm_kernel(num_layers, hidden_size, seq_len)

    # Advisory cost hint so XLA does not serialize around this tiny custom call.
    flops = 0
    in_l = seq_len
    for _ in range(num_layers):
        flops += 2 * b_pad * in_l * gate_cols + 5 * b_pad * H
        in_l = H
    flops += 2 * b_pad * H * n_cols
    transcendentals = num_layers * b_pad * (gate_cols + 2 * H)
    bytes_accessed = 4 * (x_p.size + w_slab.size + b_slab.size + b_pad * n_cols)
    cost = pl.CostEstimate(flops=flops,
                           transcendentals=transcendentals,
                           bytes_accessed=bytes_accessed)

    out_pad = pl.pallas_call(
        kernel,
        out_shape=jax.ShapeDtypeStruct((b_pad, n_cols), jnp.float32),
        grid=grid,
        in_specs=[
            pl.BlockSpec((tm, seq_len), lambda i: (i, 0)),          # x tile per step
            pl.BlockSpec((total_rows, n_cols), lambda i: (0, 0)),   # weights resident
            pl.BlockSpec((b_rows, n_cols), lambda i: (0, 0)),       # biases resident
        ],
        out_specs=pl.BlockSpec((tm, n_cols), lambda i: (i, 0)),
        compiler_params=pltpu.CompilerParams(
            dimension_semantics=("parallel",)),                     # v7x 2nd TC
        cost_estimate=cost,
    )(x_p, w_slab, b_slab)

    return out_pad[:batch, :pred_len, None]                        # (B, pred_len, 1)


def init_params(key, *, seq_len, hidden_size, num_layers, pred_len):
    """Deterministic PyTorch-style init: U(-1/sqrt(H), 1/sqrt(H))."""
    k = 1.0 / math.sqrt(hidden_size)
    params = {"layers": []}
    for l in range(num_layers):
        in_l = seq_len if l == 0 else hidden_size
        key, k1, k2, k3, k4 = jax.random.split(key, 5)
        w_ih = jax.random.uniform(k1, (4 * hidden_size, in_l), jnp.float32, -k, k)
        w_hh = jax.random.uniform(k2, (4 * hidden_size, hidden_size), jnp.float32, -k, k)
        b_ih = jax.random.uniform(k3, (4 * hidden_size,), jnp.float32, -k, k)
        b_hh = jax.random.uniform(k4, (4 * hidden_size,), jnp.float32, -k, k)
        params["layers"].append((w_ih, w_hh, b_ih, b_hh))
    key, k5, k6 = jax.random.split(key, 3)
    params["w_lin"] = jax.random.uniform(k5, (pred_len, hidden_size), jnp.float32, -k, k)
    params["b_lin"] = jax.random.uniform(k6, (pred_len,), jnp.float32, -k, k)
    return params


def reference_forward(x, params, *, num_layers, hidden_size, pred_len):
    """Pure-JAX reference mirroring the PyTorch forward (full gate math)."""
    batch = x.shape[0]
    inp = x.reshape(batch, -1).astype(jnp.float32)
    H = hidden_size
    for l in range(num_layers):
        w_ih, w_hh, b_ih, b_hh = params["layers"][l]
        h_prev = jnp.zeros((batch, H), jnp.float32)
        c_prev = jnp.zeros((batch, H), jnp.float32)
        gates = inp @ w_ih.T + h_prev @ w_hh.T + b_ih + b_hh
        i_g = jax.nn.sigmoid(gates[:, 0 * H:1 * H])
        f_g = jax.nn.sigmoid(gates[:, 1 * H:2 * H])
        g_g = jnp.tanh(gates[:, 2 * H:3 * H])
        o_g = jax.nn.sigmoid(gates[:, 3 * H:4 * H])
        c = f_g * c_prev + i_g * g_g
        inp = o_g * jnp.tanh(c)
    y = inp @ params["w_lin"].T + params["b_lin"]
    return y[:, :, None]


if __name__ == "__main__":
    # args: seq_len=16, hidden_size=32, num_layers=2, pred_len=8, dropout=0.0
    SEQ_LEN, HIDDEN, NUM_LAYERS, PRED_LEN = 16, 32, 2, 8
    BATCH = 4

    key = jax.random.PRNGKey(0)
    key, xk = jax.random.split(key)
    x = jax.random.normal(xk, (BATCH, SEQ_LEN, 1), jnp.float32)  # (B, seq_len, 1)

    params = init_params(
        key, seq_len=SEQ_LEN, hidden_size=HIDDEN,
        num_layers=NUM_LAYERS, pred_len=PRED_LEN,
    )
    w_slab, b_slab = pack_params(
        params, num_layers=NUM_LAYERS, hidden_size=HIDDEN,
        seq_len=SEQ_LEN, pred_len=PRED_LEN,
    )

    out = lstm_forward(
        x, w_slab, b_slab, num_layers=NUM_LAYERS, hidden_size=HIDDEN,
        seq_len=SEQ_LEN, pred_len=PRED_LEN,
    )
    out = jax.block_until_ready(out)

    ref = reference_forward(
        x, params, num_layers=NUM_LAYERS, hidden_size=HIDDEN, pred_len=PRED_LEN
    )
    assert out.shape == (BATCH, PRED_LEN, 1), out.shape
    assert jnp.allclose(out, ref, atol=1e-5, rtol=1e-5), float(jnp.max(jnp.abs(out - ref)))

    print("KERNEL_OK")
</pallas_src>

<mosaic_0001>
module attributes {stable_mosaic.version = 11 : i64} {
  func.func @kernel(%arg0: i32, %arg1: memref<8x16xf32, #tpu.memory_space<vmem>>, %arg2: memref<80x128xf32, #tpu.memory_space<vmem>>, %arg3: memref<8x128xf32, #tpu.memory_space<vmem>>, %arg4: memref<8x128xf32, #tpu.memory_space<vmem>>) attributes {dimension_semantics = [#tpu.dimension_semantics<parallel>], iteration_bounds = array<i64: 1>, scalar_prefetch = 0 : i64, scratch_operands = 0 : i64, tpu.core_type = #tpu.core_type<tc>, window_params = [{transform_indices = @transform_0, window_bounds = array<i64: 8, 16>}, {pipeline_mode = #tpu.pipeline_mode<synchronous>, transform_indices = @transform_1, window_bounds = array<i64: 80, 128>}, {pipeline_mode = #tpu.pipeline_mode<synchronous>, transform_indices = @transform_2, window_bounds = array<i64: 8, 128>}, {transform_indices = @transform_3, window_bounds = array<i64: 8, 128>}]} {
    %c0 = arith.constant 0 : index
    %c0_0 = arith.constant 0 : index
    %0 = vector.load %arg1[%c0, %c0_0] : memref<8x16xf32, #tpu.memory_space<vmem>>, vector<8x16xf32>
    %c0_1 = arith.constant 0 : index
    %c0_2 = arith.constant 0 : index
    %1 = vector.load %arg2[%c0_1, %c0_2] : memref<80x128xf32, #tpu.memory_space<vmem>>, vector<16x128xf32>
    %c0_3 = arith.constant 0 : index
    %c0_4 = arith.constant 0 : index
    %2 = vector.load %arg3[%c0_3, %c0_4] : memref<8x128xf32, #tpu.memory_space<vmem>>, vector<1x128xf32>
    %cst = arith.constant dense<0.000000e+00> : vector<8x128xf32>
    %3 = tpu.matmul %0, %1, %cst {dimension_numbers = #tpu.dot_dimension_numbers<[1], [0], [0], [1], [0, 0, 1, 1], [], []>} : vector<8x16xf32>, vector<16x128xf32>, vector<8x128xf32> -> vector<8x128xf32>
    %4 = vector.broadcast %2 : vector<1x128xf32> to vector<8x128xf32>
    %5 = arith.addf %3, %4 : vector<8x128xf32>
    %6 = arith.negf %5 : vector<8x128xf32>
    %7 = math.exp %6 : vector<8x128xf32>
    %cst_5 = arith.constant 1.000000e+00 : f32
    %8 = vector.broadcast %cst_5 : f32 to vector<8x128xf32>
    %9 = arith.addf %8, %7 : vector<8x128xf32>
    %10 = arith.divf %8, %9 : vector<8x128xf32>
    %11 = vector.extract_strided_slice %10 {offsets = [0, 0], sizes = [8, 32], strides = [1, 1]} : vector<8x128xf32> to vector<8x32xf32>
    %12 = vector.extract_strided_slice %10 {offsets = [0, 64], sizes = [8, 32], strides = [1, 1]} : vector<8x128xf32> to vector<8x32xf32>
    %13 = vector.extract_strided_slice %5 {offsets = [0, 32], sizes = [8, 32], strides = [1, 1]} : vector<8x128xf32> to vector<8x32xf32>
    %14 = math.tanh %13 : vector<8x32xf32>
    %15 = arith.mulf %11, %14 : vector<8x32xf32>
    %16 = math.tanh %15 : vector<8x32xf32>
    %17 = arith.mulf %12, %16 : vector<8x32xf32>
    %c16 = arith.constant 16 : index
    %c0_6 = arith.constant 0 : index
    %18 = vector.load %arg2[%c16, %c0_6] : memref<80x128xf32, #tpu.memory_space<vmem>>, vector<32x128xf32>
    %c1 = arith.constant 1 : index
    %c0_7 = arith.constant 0 : index
    %19 = vector.load %arg3[%c1, %c0_7] : memref<8x128xf32, #tpu.memory_space<vmem>>, vector<1x128xf32>
    %cst_8 = arith.constant dense<0.000000e+00> : vector<8x128xf32>
    %20 = tpu.matmul %17, %18, %cst_8 {dimension_numbers = #tpu.dot_dimension_numbers<[1], [0], [0], [1], [0, 0, 1, 1], [], []>} : vector<8x32xf32>, vector<32x128xf32>, vector<8x128xf32> -> vector<8x128xf32>
    %21 = vector.broadcast %19 : vector<1x128xf32> to vector<8x128xf32>
    %22 = arith.addf %20, %21 : vector<8x128xf32>
    %23 = arith.negf %22 : vector<8x128xf32>
    %24 = math.exp %23 : vector<8x128xf32>
    %cst_9 = arith.constant 1.000000e+00 : f32
    %25 = vector.broadcast %cst_9 : f32 to vector<8x128xf32>
    %26 = arith.addf %25, %24 : vector<8x128xf32>
    %27 = arith.divf %25, %26 : vector<8x128xf32>
    %28 = vector.extract_strided_slice %27 {offsets = [0, 0], sizes = [8, 32], strides = [1, 1]} : vector<8x128xf32> to vector<8x32xf32>
    %29 = vector.extract_strided_slice %27 {offsets = [0, 64], sizes = [8, 32], strides = [1, 1]} : vector<8x128xf32> to vector<8x32xf32>
    %30 = vector.extract_strided_slice %22 {offsets = [0, 32], sizes = [8, 32], strides = [1, 1]} : vector<8x128xf32> to vector<8x32xf32>
    %31 = math.tanh %30 : vector<8x32xf32>
    %32 = arith.mulf %28, %31 : vector<8x32xf32>
    %33 = math.tanh %32 : vector<8x32xf32>
    %34 = arith.mulf %29, %33 : vector<8x32xf32>
    %c48 = arith.constant 48 : index
    %c0_10 = arith.constant 0 : index
    %35 = vector.load %arg2[%c48, %c0_10] : memref<80x128xf32, #tpu.memory_space<vmem>>, vector<32x128xf32>
    %c2 = arith.constant 2 : index
    %c0_11 = arith.constant 0 : index
    %36 = vector.load %arg3[%c2, %c0_11] : memref<8x128xf32, #tpu.memory_space<vmem>>, vector<1x128xf32>
    %cst_12 = arith.constant dense<0.000000e+00> : vector<8x128xf32>
    %37 = tpu.matmul %34, %35, %cst_12 {dimension_numbers = #tpu.dot_dimension_numbers<[1], [0], [0], [1], [0, 0, 1, 1], [], []>} : vector<8x32xf32>, vector<32x128xf32>, vector<8x128xf32> -> vector<8x128xf32>
    %38 = vector.broadcast %36 : vector<1x128xf32> to vector<8x128xf32>
    %39 = arith.addf %37, %38 : vector<8x128xf32>
    %c0_13 = arith.constant 0 : index
    %c0_14 = arith.constant 0 : index
    %40 = vector.load %arg4[%c0_13, %c0_14] : memref<8x128xf32, #tpu.memory_space<vmem>>, vector<8x128xf32>
    tpu.vector_store %arg4[%c0_13, %c0_14], %39 {strides = array<i32>} : memref<8x128xf32, #tpu.memory_space<vmem>>, vector<8x128xf32>,
    return
  }
  func.func @transform_0(%arg0: i32) -> (i32, i32) {
    %c0_i32 = arith.constant 0 : i32
    %c0_i32_0 = arith.constant 0 : i32
    return %arg0, %c0_i32 : i32, i32
  }
  func.func @transform_1(%arg0: i32) -> (i32, i32) {
    %c0_i32 = arith.constant 0 : i32
    %c0_i32_0 = arith.constant 0 : i32
    %c0_i32_1 = arith.constant 0 : i32
    return %c0_i32, %c0_i32_0 : i32, i32
  }
  func.func @transform_2(%arg0: i32) -> (i32, i32) {
    %c0_i32 = arith.constant 0 : i32
    %c0_i32_0 = arith.constant 0 : i32
    %c0_i32_1 = arith.constant 0 : i32
    return %c0_i32, %c0_i32_0 : i32, i32
  }
  func.func @transform_3(%arg0: i32) -> (i32, i32) {
    %c0_i32 = arith.constant 0 : i32
    %c0_i32_0 = arith.constant 0 : i32
    return %arg0, %c0_i32 : i32, i32
  }
}

</mosaic_0001>

<llo_original>
// kernel: lstm_forward.1
$region0: #{lstm_forward.1}
  #allocation0 [shape = 'u32[]', space=smem, size = 0x4, offset = 0x4, fixed_abs, tag = 'smem constant byte address 0x4 - core index']
  #allocation1 [shape = 'u32[72,128]{1,0:T(1,128)}', space=vmem, size = 0x9000, scoped, tag = 'internal scratch']
  %s0 = inlined_call_operand.vmem [shape: f32[8,16], index: 0, kind: input, shape index: {}]
  %s1 = inlined_call_operand.hbm [shape: f32[80,128], index: 1, kind: input, shape index: {}]
  %s2 = inlined_call_operand.vmem [shape: f32[8,128], index: 2, kind: input, shape index: {}]
  %s3 = inlined_call_operand.vmem [shape: f32[8,128], index: 3, kind: output, shape index: {}]
  %s4 = sld [smem:[#allocation0]]
  $region26: #{lstm_forward.1} parent=0
    _
  %s6 = ssub.s32 1, %s4
  %s7 = scalar_select 0, %s6, %s4
  $region1: #{lstm_forward.1} parent=0
    #allocation2 [shape = 'u8[40960]{0}', space=vmem, size = 0xa000, scoped, tag = 'input window, operand 1, single buffered']
    #allocation3 [shape = 's32[1]{0}', space=sflag, size = 0x4, scoped, tag = 'scoped memory for lstm_forward.1']
    %8 = vsyncpa [#allocation3], 0
    // Predicated region
    $region2: #{lstm_forward.1} parent=1 // pred_check
      _
    $region3: #{lstm_forward.1} parent=1 // pred_check_branch
      %10 = sbr.rel (0) target = $region5
    $region4: #{lstm_forward.1} parent=1 // pred_region
      _
    $region5: #{lstm_forward.1} parent=1 // pred_fallthru
      _
    // Predicated region
    $region6: #{lstm_forward.1} parent=1 // pred_check
      _
    $region7: #{lstm_forward.1} parent=1 // pred_check_branch
      %12 = sbr.rel (0) target = $region9
    $region8: #{lstm_forward.1} parent=1 // pred_region
      %14 = vsyncadd [#allocation3], 0
      %s15 = sshll.u32 %s1, 4
      %s16 = int_to_ptr.hbm [resolvable:$true] %s15
      %s17 = sshll.u32 [#allocation2], 4
      %s18 = int_to_ptr.vmem [resolvable:$true] %s17
      %23 = dma.hbm_to_vmem [thread:$0]  %s16, 1280, %s18, [#allocation3], 128, 128, 8
    $region9: #{lstm_forward.1} parent=1 // pred_fallthru
      _
    // Predicated region
    $region10: #{lstm_forward.1} parent=1 // pred_check
      _
    $region11: #{lstm_forward.1} parent=1 // pred_check_branch
      %25 = sbr.rel (0) target = $region13
    $region12: #{lstm_forward.1} parent=1 // pred_region
      _
    $region13: #{lstm_forward.1} parent=1 // pred_fallthru
      _
    // Predicated region
    $region14: #{lstm_forward.1} parent=1 // pred_check
      _
    $region15: #{lstm_forward.1} parent=1 // pred_check_branch
      %27 = sbr.rel (0) target = $region17
    $region16: #{lstm_forward.1} parent=1 // pred_region
      %29 = dma.done [#allocation3], 1280
    $region17: #{lstm_forward.1} parent=1 // pred_fallthru
      _
    %v30 = vld [vmem:[%s0] sm:$0xff]
    %v31 = vld [vmem:[#allocation2] sm:$0xff]
    %v32 = vld [vmem:[#allocation2 + $0x8] sm:$0xff]
    %v33 = vld [vmem:[%s2] sm:$0x1]
    %v34 = vperm.slane %v33, 0
    %vm35 = vcmask 130048
    %v37 = vsel %vm35, %v30, 0
    %39 = vmatpush.msra.mxu0 0.0
    %40 = vmatpush.msra.mxu0 0.0
    %41 = vmatpush.msra.mxu0 0.0
    %42 = vmatpush.msra.mxu0 0.0
    %43 = vmatpush.msra.mxu0 0.0
    %44 = vmatpush.msra.mxu0 0.0
    %45 = vmatpush.msra.mxu0 0.0
    %46 = vmatpush.msra.mxu0 0.0
    %47 = vmatpush.msra.mxu0 0.0
    %48 = vmatpush.msra.mxu0 0.0
    %49 = vmatpush.msra.mxu0 0.0
    %50 = vmatpush.msra.mxu0 0.0
    %51 = vmatpush.msra.mxu0 0.0
    %52 = vmatpush.msra.mxu0 0.0
    %53 = vmatpush.msra.mxu0 %v32
    %54 = vmatpush.msra.mxu0 %v31
    %55 = vmatmul.f32.gmra.mxu0 %v37
    %v56 = vpop.f32.mrf.mxu0
    %v57 = vadd.f32 %v34, %v56
    %58 = vdwg.mxu0
    %v59 = vxor.u32 %v57, 2147483648
    %v60 = vmul.f32 %v59, 1.442695
    %v61 = vpow.pop %v60
    %v62 = vadd.f32 %v61, 1.0
    %v63 = vrcp.pop %v62
    %v64 = vmul.f32 %v62, %v63
    %v65 = vsub.f32 1.0, %v64
    %v66 = vmul.f32 %v63, %v65
    %v67 = vadd.f32 %v63, %v66
    %vm68 = vweird.f32 %v62
    %vm69 = vweird.f32 %v63
    %vm70 = vmor %vm68, %vm69
    %v71 = vsel %vm70, %v63, %v67
    %v72 = vand.u32 2147483647, %v62
    %vm73 = vcmp.eq.f32.partialorder %v72, 8.507059e+37
    %v74 = vand.u32 %v62, 2147483648
    %v75 = vor.u32 1.1754944e-38, %v74
    %v76 = vsel %vm73, %v75, %v71
    %v77 = vmul.f32 1.0, %v76
    %v78 = vtanh.pop %v57
    %80 = vrot.lane.b32.xlu0 %v78, 96
    %v81 = vpop.permute.xlu0 %80
    %v83 = vmul.f32 %v77, %v81
    %v84 = vtanh.pop %v83
    %86 = vrot.lane.b32.xlu0 %v84, 64
    %v87 = vpop.permute.xlu0 %86
    %v89 = vmul.f32 %v77, %v87
    %v90 = vld [vmem:[#allocation2 + $0x10] sm:$0xff]
    %v91 = vld [vmem:[#allocation2 + $0x18] sm:$0xff]
    %v92 = vld [vmem:[#allocation2 + $0x20] sm:$0xff]
    %v93 = vld [vmem:[#allocation2 + $0x28] sm:$0xff]
    %v94 = vld [vmem:[%s2 + $0x1] sm:$0x1]
    %v95 = vperm.slane %v94, 0
    %97 = vrot.lane.b32.xlu0 %v89, 64
    %v98 = vpop.permute.xlu0 %97
    %vm99 = vcmask 261120
    %v100 = vsel %vm99, %v98, 0
    %102 = vmatpush.msra.mxu0 0.0
    %103 = vmatpush.msra.mxu0 0.0
    %104 = vmatpush.msra.mxu0 0.0
    %105 = vmatpush.msra.mxu0 0.0
    %106 = vmatpush.msra.mxu0 0.0
    %107 = vmatpush.msra.mxu0 0.0
    %108 = vmatpush.msra.mxu0 0.0
    %109 = vmatpush.msra.mxu0 0.0
    %110 = vmatpush.msra.mxu0 0.0
    %111 = vmatpush.msra.mxu0 0.0
    %112 = vmatpush.msra.mxu0 0.0
    %113 = vmatpush.msra.mxu0 0.0
    %114 = vmatpush.msra.mxu0 %v93
    %115 = vmatpush.msra.mxu0 %v92
    %116 = vmatpush.msra.mxu0 %v91
    %117 = vmatpush.msra.mxu0 %v90
    %118 = vmatmul.f32.gmra.mxu0 %v100
    %v119 = vpop.f32.mrf.mxu0
    %v120 = vadd.f32 %v95, %v119
    %121 = vdwg.mxu0
    %v122 = vxor.u32 %v120, 2147483648
    %v123 = vmul.f32 %v122, 1.442695
    %v124 = vpow.pop %v123
    %v125 = vadd.f32 %v124, 1.0
    %v126 = vrcp.pop %v125
    %v127 = vmul.f32 %v125, %v126
    %v128 = vsub.f32 1.0, %v127
    %v129 = vmul.f32 %v126, %v128
    %v130 = vadd.f32 %v126, %v129
    %vm131 = vweird.f32 %v125
    %vm132 = vweird.f32 %v126
    %vm133 = vmor %vm131, %vm132
    %v134 = vsel %vm133, %v126, %v130
    %v135 = vand.u32 2147483647, %v125
    %vm136 = vcmp.eq.f32.partialorder %v135, 8.507059e+37
    %v137 = vand.u32 %v125, 2147483648
    %v138 = vor.u32 1.1754944e-38, %v137
    %v139 = vsel %vm136, %v138, %v134
    %v140 = vmul.f32 1.0, %v139
    %v141 = vtanh.pop %v120
    %143 = vrot.lane.b32.xlu0 %v141, 96
    %v144 = vpop.permute.xlu0 %143
    %v146 = vmul.f32 %v140, %v144
    %v147 = vtanh.pop %v146
    %149 = vrot.lane.b32.xlu0 %v147, 64
    %v150 = vpop.permute.xlu0 %149
    %v152 = vmul.f32 %v140, %v150
    %v153 = vld [vmem:[#allocation2 + $0x30] sm:$0xff]
    %v154 = vld [vmem:[#allocation2 + $0x38] sm:$0xff]
    %v155 = vld [vmem:[#allocation2 + $0x40] sm:$0xff]
    %v156 = vld [vmem:[#allocation2 + $0x48] sm:$0xff]
    %v157 = vld [vmem:[%s2 + $0x2] sm:$0x1]
    %v158 = vperm.slane %v157, 0
    %160 = vrot.lane.b32.xlu0 %v152, 64
    %v161 = vpop.permute.xlu0 %160
    %v162 = vsel %vm99, %v161, 0
    %164 = vmatpush.msra.mxu0 0.0
    %165 = vmatpush.msra.mxu0 0.0
    %166 = vmatpush.msra.mxu0 0.0
    %167 = vmatpush.msra.mxu0 0.0
    %168 = vmatpush.msra.mxu0 0.0
    %169 = vmatpush.msra.mxu0 0.0
    %170 = vmatpush.msra.mxu0 0.0
    %171 = vmatpush.msra.mxu0 0.0
    %172 = vmatpush.msra.mxu0 0.0
    %173 = vmatpush.msra.mxu0 0.0
    %174 = vmatpush.msra.mxu0 0.0
    %175 = vmatpush.msra.mxu0 0.0
    %176 = vmatpush.msra.mxu0 %v156
    %177 = vmatpush.msra.mxu0 %v155
    %178 = vmatpush.msra.mxu0 %v154
    %179 = vmatpush.msra.mxu0 %v153
    %180 = vmatmul.f32.gmra.mxu0 %v162
    %v181 = vpop.f32.mrf.mxu0
    %v182 = vadd.f32 %v158, %v181
    %183 = vdwg.mxu0
    %184 = vst [vmem:[%s3] sm:$0xff] %v182
    // Predicated region
    $region18: #{lstm_forward.1} parent=1 // pred_check
      _
    $region19: #{lstm_forward.1} parent=1 // pred_check_branch
      %186 = sbr.rel (0) target = $region21
    $region20: #{lstm_forward.1} parent=1 // pred_region
      _
    $region21: #{lstm_forward.1} parent=1 // pred_fallthru
      _
    // Predicated region
    $region22: #{lstm_forward.1} parent=1 // pred_check
      _
    $region23: #{lstm_forward.1} parent=1 // pred_check_branch
      %188 = sbr.rel (0) target = $region25
    $region24: #{lstm_forward.1} parent=1 // pred_region
      _
    $region25: #{lstm_forward.1} parent=1 // pred_fallthru
      _
    %189 = vsyncpa [#allocation3], 1

</llo_original>
